<compile_context>
chip_gen: v7x
topology: tpu7x:2x2x1
jax: 0.10.0
libtpu: 0.0.40
codegen_flags: <defaults>
</compile_context>

<pallas_src>
import jax
import jax.numpy as jnp
from jax.experimental import pallas as pl
from jax.experimental.pallas import tpu as pltpu

POOL = 4


def _atan_f32(x):
    # torch.atan equivalent built from ops guaranteed to lower in Mosaic
    # (abs, compare, select, mul, add, one div).  Cephes atanf range
    # reduction + degree-4 polynomial: float32-accurate (~1e-7 abs error).
    sgn = jnp.where(x < 0.0, -1.0, 1.0)
    ax = jnp.abs(x)
    tan3pi8 = 2.414213562373095
    tanpi8 = 0.4142135623730950
    big = ax > tan3pi8
    mid = jnp.logical_and(ax <= tan3pi8, ax > tanpi8)
    # Single select-chosen division (den is ax only when ax > tan3pi8 > 0,
    # so no divide-by-zero guard is needed).
    num = jnp.where(big, -1.0, jnp.where(mid, ax - 1.0, ax))
    den = jnp.where(big, ax, jnp.where(mid, ax + 1.0, 1.0))
    xr = num / den
    y0 = jnp.where(big, jnp.float32(jnp.pi / 2),
                   jnp.where(mid, jnp.float32(jnp.pi / 4), jnp.float32(0.0)))
    z = xr * xr
    p = (((8.05374449538e-2 * z - 1.38776856032e-1) * z
          + 1.99777106478e-1) * z - 3.33329491539e-1)
    y = y0 + p * z * xr + xr
    return sgn * y


def _kernel(x_ref, pm_ref, w3_ref, b3_ref, wpy_ref, bpy_ref, o_ref):
    f32 = jnp.float32
    hw = pm_ref.shape[0]          # H*W
    pm = pm_ref[...]              # (H*W, n_feat) pool+flatten operator

    # AvgPool2d(4,4) + Flatten for both flow channels: two matmuls whose
    # output lanes are already in flattened (hp*Wp + wp) feature order.
    px = jnp.dot(x_ref[:, 0:hw], pm, preferred_element_type=f32)        # (BB, nf)
    py = jnp.dot(x_ref[:, hw:2 * hw], pm, preferred_element_type=f32)   # (BB, nf)

    # Linear_x / Linear_y / Linear_tan (weights stacked along axis 0).
    lx = jnp.dot(px, w3_ref[0], preferred_element_type=f32) + b3_ref[0]
    ly = jnp.dot(py, w3_ref[1], preferred_element_type=f32) + b3_ref[1]
    tan = lx / ly                 # matches torch semantics (no denom guard)
    lt = jnp.dot(tan, w3_ref[2], preferred_element_type=f32) + b3_ref[2]
    at = _atan_f32(lt)

    # Collapsed Linear_pitch / Linear_yaw + AvgPool1d(n_feat) + abs + hstack:
    # one (BB, n_feat) @ (n_feat, 2) matmul written straight to the output.
    o_ref[...] = jnp.abs(
        jnp.dot(at, wpy_ref[...], preferred_element_type=f32) + bpy_ref[...])


def init_params(key, n_feat):
    # Deterministic init matching nn.Linear's U(-1/sqrt(in), 1/sqrt(in)).
    names = ["x", "y", "tan", "pitch", "yaw"]
    k = 1.0 / float(jnp.sqrt(jnp.float32(n_feat)))
    keys = jax.random.split(key, 2 * len(names))
    params = {}
    for i, name in enumerate(names):
        w = jax.random.uniform(keys[2 * i], (n_feat, n_feat), jnp.float32, -k, k)
        b = jax.random.uniform(keys[2 * i + 1], (1, n_feat), jnp.float32, -k, k)
        params[name] = (w, b)
    return params


def prepare_params(params, H, W):
    """One-time preprocessing, hoisted out of the per-call forward path."""
    Hp = (H - POOL) // POOL + 1
    Wp = (W - POOL) // POOL + 1
    Ht, Wt = Hp * POOL, Wp * POOL
    n_feat = Hp * Wp

    # Pool+flatten operator: PM[h*W+w, hp*Wp+wp] = 1/16 on the 4x4 window,
    # zero on rows/cols that AvgPool2d's floor semantics crop away.
    idx = jnp.arange(H * W)
    h, w = idx // W, idx % W
    valid = jnp.logical_and(h < Ht, w < Wt)
    col = (h // POOL) * Wp + (w // POOL)
    pm = jnp.where(
        valid[:, None],
        (col[:, None] == jnp.arange(n_feat)[None, :]).astype(jnp.float32),
        0.0) / float(POOL * POOL)

    # Stack the three square weights / biases -> 2 DMAs instead of 6.
    w3 = jnp.stack([params["x"][0], params["y"][0], params["tan"][0]])   # (3,nf,nf)
    b3 = jnp.stack([params["x"][1], params["y"][1], params["tan"][1]])   # (3,1,nf)

    # Collapse Linear_pitch / Linear_yaw + AvgPool1d(n_feat):
    # mean(a @ W + b) == a @ mean_cols(W) + mean(b)   (full-width 1-D pool).
    wpy = jnp.concatenate([params["pitch"][0].mean(axis=1, keepdims=True),
                           params["yaw"][0].mean(axis=1, keepdims=True)], axis=1)
    bpy = jnp.concatenate([params["pitch"][1].mean(axis=1, keepdims=True),
                           params["yaw"][1].mean(axis=1, keepdims=True)], axis=1)
    return {"pm": pm, "w3": w3, "b3": b3, "wpy": wpy, "bpy": bpy,
            "n_feat": n_feat}


def _batch_block(B):
    # Row-block size for the batch grid: multiple of 8 (sublane tile) when
    # splitting, else the full batch in one step.
    if B <= 8:
        return B
    for bb in (256, 128, 64, 32, 16, 8):
        if B % bb == 0:
            return bb
    return B


def optical_flow_regression(x, prep):
    B, C, H, W = x.shape
    n_feat = prep["n_feat"]
    hw = H * W
    x = x.astype(jnp.float32)

    # Present flow_x|flow_y as the leading 2*H*W lanes of each batch row.
    # No transpose and (when possible) no slice copy: the kernel's BlockSpec
    # reads only the first 2*H*W lanes of each row straight from HBM.
    if C == 2:
        x2 = x.reshape(B, 2 * hw)
    elif (2 * hw) % 128 == 0:
        x2 = x.reshape(B, C * hw)          # free contiguous reshape
    else:
        x2 = x[:, :2].reshape(B, 2 * hw)   # fallback: minimal slice copy

    BB = _batch_block(B)
    grid = (B // BB,)

    cost = pl.CostEstimate(
        flops=2 * B * (2 * hw * n_feat + 3 * n_feat * n_feat + 2 * n_feat),
        transcendentals=2 * B * n_feat,
        bytes_accessed=4 * (B * 2 * hw + hw * n_feat + 3 * n_feat * n_feat
                            + 3 * n_feat + 2 * n_feat + 2 + 2 * B),
    )

    return pl.pallas_call(
        _kernel,
        out_shape=jax.ShapeDtypeStruct((B, 2), jnp.float32),
        grid=grid,
        in_specs=[
            pl.BlockSpec((BB, 2 * hw), lambda i: (i, 0)),
            pl.BlockSpec(prep["pm"].shape, lambda i: (0, 0)),
            pl.BlockSpec(prep["w3"].shape, lambda i: (0, 0, 0)),
            pl.BlockSpec(prep["b3"].shape, lambda i: (0, 0, 0)),
            pl.BlockSpec(prep["wpy"].shape, lambda i: (0, 0)),
            pl.BlockSpec(prep["bpy"].shape, lambda i: (0, 0)),
        ],
        out_specs=pl.BlockSpec((BB, 2), lambda i: (i, 0)),
        compiler_params=pltpu.CompilerParams(
            dimension_semantics=("parallel",)),
        cost_estimate=cost,
    )(x2, prep["pm"], prep["w3"], prep["b3"], prep["wpy"], prep["bpy"])


def ref_forward(x, params):
    # Plain-JAX reference mirroring the PyTorch module (full pitch/yaw
    # weights, explicit pooling) for verification.
    B, C, H, W = x.shape
    Hp = (H - POOL) // POOL + 1
    Wp = (W - POOL) // POOL + 1

    def pool2d(a):
        a = a[:, :Hp * POOL, :Wp * POOL]
        return a.reshape(B, Hp, POOL, Wp, POOL).mean(axis=(2, 4))

    lin = lambda v, p: v @ p[0] + p[1]
    px = pool2d(x[:, 0]).reshape(B, -1)
    py = pool2d(x[:, 1]).reshape(B, -1)
    lx = lin(px, params["x"])
    ly = lin(py, params["y"])
    at = jnp.arctan(lin(lx / ly, params["tan"]))
    pitch = lin(at, params["pitch"])
    yaw = lin(at, params["yaw"])
    return jnp.concatenate(
        [jnp.abs(pitch.mean(-1, keepdims=True)),
         jnp.abs(yaw.mean(-1, keepdims=True))], axis=1)


if __name__ == "__main__":
    key = jax.random.PRNGKey(0)
    kx, kp = jax.random.split(key)
    B, C, H, W = 2, 4, 16, 16
    x = jax.random.normal(kx, (B, C, H, W), jnp.float32)

    Hp = (H - POOL) // POOL + 1
    Wp = (W - POOL) // POOL + 1
    params = init_params(kp, Hp * Wp)
    prep = prepare_params(params, H, W)   # hoisted one-time preprocessing

    out = optical_flow_regression(x, prep)
    jax.block_until_ready(out)

    ref = ref_forward(x, params)
    assert out.shape == (B, 2), out.shape
    assert jnp.allclose(out, ref, atol=1e-4, rtol=1e-4), (out, ref)
    print("KERNEL_OK")
</pallas_src>

<mosaic_0001>
module attributes {stable_mosaic.version = 11 : i64} {
  func.func @_kernel(%arg0: i32, %arg1: memref<2x512xf32, #tpu.memory_space<vmem>>, %arg2: memref<256x16xf32, #tpu.memory_space<vmem>>, %arg3: memref<3x16x16xf32, #tpu.memory_space<vmem>>, %arg4: memref<3x1x16xf32, #tpu.memory_space<vmem>>, %arg5: memref<16x2xf32, #tpu.memory_space<vmem>>, %arg6: memref<1x2xf32, #tpu.memory_space<vmem>>, %arg7: memref<2x2xf32, #tpu.memory_space<vmem>>) attributes {dimension_semantics = [#tpu.dimension_semantics<parallel>], iteration_bounds = array<i64: 1>, scalar_prefetch = 0 : i64, scratch_operands = 0 : i64, tpu.core_type = #tpu.core_type<tc>, window_params = [{transform_indices = @transform_0, window_bounds = array<i64: 2, 512>}, {pipeline_mode = #tpu.pipeline_mode<synchronous>, transform_indices = @transform_1, window_bounds = array<i64: 256, 16>}, {pipeline_mode = #tpu.pipeline_mode<synchronous>, transform_indices = @transform_2, window_bounds = array<i64: 3, 16, 16>}, {pipeline_mode = #tpu.pipeline_mode<synchronous>, transform_indices = @transform_3, window_bounds = array<i64: 3, 1, 16>}, {pipeline_mode = #tpu.pipeline_mode<synchronous>, transform_indices = @transform_4, window_bounds = array<i64: 16, 2>}, {pipeline_mode = #tpu.pipeline_mode<synchronous>, transform_indices = @transform_5, window_bounds = array<i64: 1, 2>}, {transform_indices = @transform_6, window_bounds = array<i64: 2, 2>}]} {
    %c0 = arith.constant 0 : index
    %c0_0 = arith.constant 0 : index
    %0 = vector.load %arg2[%c0, %c0_0] : memref<256x16xf32, #tpu.memory_space<vmem>>, vector<256x16xf32>
    %c0_1 = arith.constant 0 : index
    %c0_2 = arith.constant 0 : index
    %1 = vector.load %arg1[%c0_1, %c0_2] : memref<2x512xf32, #tpu.memory_space<vmem>>, vector<2x256xf32>
    %cst = arith.constant dense<0.000000e+00> : vector<2x16xf32>
    %2 = tpu.matmul %1, %0, %cst {dimension_numbers = #tpu.dot_dimension_numbers<[1], [0], [0], [1], [0, 0, 1, 1], [], []>} : vector<2x256xf32>, vector<256x16xf32>, vector<2x16xf32> -> vector<2x16xf32>
    %c0_3 = arith.constant 0 : index
    %c256 = arith.constant 256 : index
    %3 = vector.load %arg1[%c0_3, %c256] : memref<2x512xf32, #tpu.memory_space<vmem>>, vector<2x256xf32>
    %cst_4 = arith.constant dense<0.000000e+00> : vector<2x16xf32>
    %4 = tpu.matmul %3, %0, %cst_4 {dimension_numbers = #tpu.dot_dimension_numbers<[1], [0], [0], [1], [0, 0, 1, 1], [], []>} : vector<2x256xf32>, vector<256x16xf32>, vector<2x16xf32> -> vector<2x16xf32>
    %c0_5 = arith.constant 0 : index
    %c0_6 = arith.constant 0 : index
    %c0_7 = arith.constant 0 : index
    %5 = vector.load %arg3[%c0_5, %c0_6, %c0_7] : memref<3x16x16xf32, #tpu.memory_space<vmem>>, vector<1x16x16xf32>
    %6 = vector.shape_cast %5 : vector<1x16x16xf32> to vector<16x16xf32>
    %cst_8 = arith.constant dense<0.000000e+00> : vector<2x16xf32>
    %7 = tpu.matmul %2, %6, %cst_8 {dimension_numbers = #tpu.dot_dimension_numbers<[1], [0], [0], [1], [0, 0, 1, 1], [], []>} : vector<2x16xf32>, vector<16x16xf32>, vector<2x16xf32> -> vector<2x16xf32>
    %c0_9 = arith.constant 0 : index
    %c0_10 = arith.constant 0 : index
    %c0_11 = arith.constant 0 : index
    %8 = vector.load %arg4[%c0_9, %c0_10, %c0_11] : memref<3x1x16xf32, #tpu.memory_space<vmem>>, vector<1x1x16xf32>
    %9 = vector.shape_cast %8 : vector<1x1x16xf32> to vector<1x16xf32>
    %10 = vector.broadcast %9 : vector<1x16xf32> to vector<2x16xf32>
    %11 = arith.addf %7, %10 : vector<2x16xf32>
    %c1 = arith.constant 1 : index
    %c0_12 = arith.constant 0 : index
    %c0_13 = arith.constant 0 : index
    %12 = vector.load %arg3[%c1, %c0_12, %c0_13] : memref<3x16x16xf32, #tpu.memory_space<vmem>>, vector<1x16x16xf32>
    %13 = vector.shape_cast %12 : vector<1x16x16xf32> to vector<16x16xf32>
    %cst_14 = arith.constant dense<0.000000e+00> : vector<2x16xf32>
    %14 = tpu.matmul %4, %13, %cst_14 {dimension_numbers = #tpu.dot_dimension_numbers<[1], [0], [0], [1], [0, 0, 1, 1], [], []>} : vector<2x16xf32>, vector<16x16xf32>, vector<2x16xf32> -> vector<2x16xf32>
    %c1_15 = arith.constant 1 : index
    %c0_16 = arith.constant 0 : index
    %c0_17 = arith.constant 0 : index
    %15 = vector.load %arg4[%c1_15, %c0_16, %c0_17] : memref<3x1x16xf32, #tpu.memory_space<vmem>>, vector<1x1x16xf32>
    %16 = vector.shape_cast %15 : vector<1x1x16xf32> to vector<1x16xf32>
    %17 = vector.broadcast %16 : vector<1x16xf32> to vector<2x16xf32>
    %18 = arith.addf %14, %17 : vector<2x16xf32>
    %19 = arith.divf %11, %18 : vector<2x16xf32>
    %c2 = arith.constant 2 : index
    %c0_18 = arith.constant 0 : index
    %c0_19 = arith.constant 0 : index
    %20 = vector.load %arg3[%c2, %c0_18, %c0_19] : memref<3x16x16xf32, #tpu.memory_space<vmem>>, vector<1x16x16xf32>
    %21 = vector.shape_cast %20 : vector<1x16x16xf32> to vector<16x16xf32>
    %cst_20 = arith.constant dense<0.000000e+00> : vector<2x16xf32>
    %22 = tpu.matmul %19, %21, %cst_20 {dimension_numbers = #tpu.dot_dimension_numbers<[1], [0], [0], [1], [0, 0, 1, 1], [], []>} : vector<2x16xf32>, vector<16x16xf32>, vector<2x16xf32> -> vector<2x16xf32>
    %c2_21 = arith.constant 2 : index
    %c0_22 = arith.constant 0 : index
    %c0_23 = arith.constant 0 : index
    %23 = vector.load %arg4[%c2_21, %c0_22, %c0_23] : memref<3x1x16xf32, #tpu.memory_space<vmem>>, vector<1x1x16xf32>
    %24 = vector.shape_cast %23 : vector<1x1x16xf32> to vector<1x16xf32>
    %25 = vector.broadcast %24 : vector<1x16xf32> to vector<2x16xf32>
    %26 = arith.addf %22, %25 : vector<2x16xf32>
    %cst_24 = arith.constant 0.000000e+00 : f32
    %27 = vector.broadcast %cst_24 : f32 to vector<2x16xf32>
    %28 = arith.cmpf olt, %26, %27 : vector<2x16xf32>
    %cst_25 = arith.constant -1.000000e+00 : f32
    %cst_26 = arith.constant 1.000000e+00 : f32
    %29 = vector.broadcast %cst_25 : f32 to vector<2x16xf32>
    %30 = vector.broadcast %cst_26 : f32 to vector<2x16xf32>
    %31 = arith.select %28, %29, %30 : vector<2x16xi1>, vector<2x16xf32>
    %32 = math.absf %26 : vector<2x16xf32>
    %cst_27 = arith.constant 2.41421366 : f32
    %33 = vector.broadcast %cst_27 : f32 to vector<2x16xf32>
    %34 = arith.cmpf ogt, %32, %33 : vector<2x16xf32>
    %cst_28 = arith.constant 2.41421366 : f32
    %35 = vector.broadcast %cst_28 : f32 to vector<2x16xf32>
    %36 = arith.cmpf ole, %32, %35 : vector<2x16xf32>
    %cst_29 = arith.constant 0.414213568 : f32
    %37 = vector.broadcast %cst_29 : f32 to vector<2x16xf32>
    %38 = arith.cmpf ogt, %32, %37 : vector<2x16xf32>
    %39 = arith.andi %36, %38 : vector<2x16xi1>
    %cst_30 = arith.constant 1.000000e+00 : f32
    %40 = vector.broadcast %cst_30 : f32 to vector<2x16xf32>
    %41 = arith.subf %32, %40 : vector<2x16xf32>
    %42 = arith.select %39, %41, %32 : vector<2x16xi1>, vector<2x16xf32>
    %cst_31 = arith.constant -1.000000e+00 : f32
    %43 = vector.broadcast %cst_31 : f32 to vector<2x16xf32>
    %44 = arith.select %34, %43, %42 : vector<2x16xi1>, vector<2x16xf32>
    %cst_32 = arith.constant 1.000000e+00 : f32
    %45 = vector.broadcast %cst_32 : f32 to vector<2x16xf32>
    %46 = arith.addf %32, %45 : vector<2x16xf32>
    %cst_33 = arith.constant 1.000000e+00 : f32
    %47 = vector.broadcast %cst_33 : f32 to vector<2x16xf32>
    %48 = arith.select %39, %46, %47 : vector<2x16xi1>, vector<2x16xf32>
    %49 = arith.select %34, %32, %48 : vector<2x16xi1>, vector<2x16xf32>
    %50 = arith.divf %44, %49 : vector<2x16xf32>
    %cst_34 = arith.constant 0.785398185 : f32
    %cst_35 = arith.constant 0.000000e+00 : f32
    %51 = vector.broadcast %cst_34 : f32 to vector<2x16xf32>
    %52 = vector.broadcast %cst_35 : f32 to vector<2x16xf32>
    %53 = arith.select %39, %51, %52 : vector<2x16xi1>, vector<2x16xf32>
    %cst_36 = arith.constant 1.57079637 : f32
    %54 = vector.broadcast %cst_36 : f32 to vector<2x16xf32>
    %55 = arith.select %34, %54, %53 : vector<2x16xi1>, vector<2x16xf32>
    %56 = arith.mulf %50, %50 : vector<2x16xf32>
    %cst_37 = arith.constant 0.0805374458 : f32
    %57 = vector.broadcast %cst_37 : f32 to vector<2x16xf32>
    %58 = arith.mulf %57, %56 : vector<2x16xf32>
    %cst_38 = arith.constant 0.138776854 : f32
    %59 = vector.broadcast %cst_38 : f32 to vector<2x16xf32>
    %60 = arith.subf %58, %59 : vector<2x16xf32>
    %61 = arith.mulf %60, %56 : vector<2x16xf32>
    %cst_39 = arith.constant 0.199777111 : f32
    %62 = vector.broadcast %cst_39 : f32 to vector<2x16xf32>
    %63 = arith.addf %61, %62 : vector<2x16xf32>
    %64 = arith.mulf %63, %56 : vector<2x16xf32>
    %cst_40 = arith.constant 0.333329499 : f32
    %65 = vector.broadcast %cst_40 : f32 to vector<2x16xf32>
    %66 = arith.subf %64, %65 : vector<2x16xf32>
    %67 = arith.mulf %66, %56 : vector<2x16xf32>
    %68 = arith.mulf %67, %50 : vector<2x16xf32>
    %69 = arith.addf %55, %68 : vector<2x16xf32>
    %70 = arith.addf %69, %50 : vector<2x16xf32>
    %71 = arith.mulf %31, %70 : vector<2x16xf32>
    %c0_41 = arith.constant 0 : index
    %c0_42 = arith.constant 0 : index
    %72 = vector.load %arg5[%c0_41, %c0_42] : memref<16x2xf32, #tpu.memory_space<vmem>>, vector<16x2xf32>
    %cst_43 = arith.constant dense<0.000000e+00> : vector<2x2xf32>
    %73 = tpu.matmul %71, %72, %cst_43 {dimension_numbers = #tpu.dot_dimension_numbers<[1], [0], [0], [1], [0, 0, 1, 1], [], []>} : vector<2x16xf32>, vector<16x2xf32>, vector<2x2xf32> -> vector<2x2xf32>
    %c0_44 = arith.constant 0 : index
    %c0_45 = arith.constant 0 : index
    %74 = vector.load %arg6[%c0_44, %c0_45] : memref<1x2xf32, #tpu.memory_space<vmem>>, vector<1x2xf32>
    %75 = vector.broadcast %74 : vector<1x2xf32> to vector<2x2xf32>
    %76 = arith.addf %73, %75 : vector<2x2xf32>
    %77 = math.absf %76 : vector<2x2xf32>
    %c0_46 = arith.constant 0 : index
    %c0_47 = arith.constant 0 : index
    %78 = vector.load %arg7[%c0_46, %c0_47] : memref<2x2xf32, #tpu.memory_space<vmem>>, vector<2x2xf32>
    tpu.vector_store %arg7[%c0_46, %c0_47], %77 {strides = array<i32>} : memref<2x2xf32, #tpu.memory_space<vmem>>, vector<2x2xf32>,
    return
  }
  func.func @transform_0(%arg0: i32) -> (i32, i32) {
    %c0_i32 = arith.constant 0 : i32
    %c0_i32_0 = arith.constant 0 : i32
    return %arg0, %c0_i32 : i32, i32
  }
  func.func @transform_1(%arg0: i32) -> (i32, i32) {
    %c0_i32 = arith.constant 0 : i32
    %c0_i32_0 = arith.constant 0 : i32
    %c0_i32_1 = arith.constant 0 : i32
    return %c0_i32, %c0_i32_0 : i32, i32
  }
  func.func @transform_2(%arg0: i32) -> (i32, i32, i32) {
    %c0_i32 = arith.constant 0 : i32
    %c0_i32_0 = arith.constant 0 : i32
    %c0_i32_1 = arith.constant 0 : i32
    %c0_i32_2 = arith.constant 0 : i32
    return %c0_i32, %c0_i32_0, %c0_i32_1 : i32, i32, i32
  }
  func.func @transform_3(%arg0: i32) -> (i32, i32, i32) {
    %c0_i32 = arith.constant 0 : i32
    %c0_i32_0 = arith.constant 0 : i32
    %c0_i32_1 = arith.constant 0 : i32
    %c0_i32_2 = arith.constant 0 : i32
    return %c0_i32, %c0_i32_0, %c0_i32_1 : i32, i32, i32
  }
  func.func @transform_4(%arg0: i32) -> (i32, i32) {
    %c0_i32 = arith.constant 0 : i32
    %c0_i32_0 = arith.constant 0 : i32
    %c0_i32_1 = arith.constant 0 : i32
    return %c0_i32, %c0_i32_0 : i32, i32
  }
  func.func @transform_5(%arg0: i32) -> (i32, i32) {
    %c0_i32 = arith.constant 0 : i32
    %c0_i32_0 = arith.constant 0 : i32
    %c0_i32_1 = arith.constant 0 : i32
    return %c0_i32, %c0_i32_0 : i32, i32
  }
  func.func @transform_6(%arg0: i32) -> (i32, i32) {
    %c0_i32 = arith.constant 0 : i32
    %c0_i32_0 = arith.constant 0 : i32
    return %arg0, %c0_i32 : i32, i32
  }
}

</mosaic_0001>

<llo_original>
// kernel: tpu_custom_call.1
$region0: #{tpu_custom_call.1}
  #allocation0 [shape = 'u32[]', space=smem, size = 0x4, offset = 0x4, fixed_abs, tag = 'smem constant byte address 0x4 - core index']
  #allocation1 [shape = 'u32[144,128]{1,0:T(1,128)}', space=vmem, size = 0x12000, scoped, tag = 'internal scratch']
  %s0 = inlined_call_operand.vmem [shape: f32[2,1024], index: 0, kind: input, shape index: {}]
  %s1 = inlined_call_operand.vmem [shape: f32[256,16], index: 1, kind: input, shape index: {}]
  %s2 = inlined_call_operand.vmem [shape: f32[3,16,16], index: 2, kind: input, shape index: {}]
  %s3 = inlined_call_operand.vmem [shape: f32[3,1,16], index: 3, kind: input, shape index: {}]
  %s4 = inlined_call_operand.vmem [shape: f32[16,2], index: 4, kind: input, shape index: {}]
  %s5 = inlined_call_operand.vmem [shape: f32[1,2], index: 5, kind: input, shape index: {}]
  %s6 = inlined_call_operand.hbm [shape: f32[2,2], index: 6, kind: output, shape index: {}]
  %s7 = sld [smem:[#allocation0]]
  $region34: #{tpu_custom_call.1} parent=0
    _
  %s9 = ssub.s32 1, %s7
  %s10 = scalar_select 0, %s9, %s7
  $region1: #{tpu_custom_call.1} parent=0
    #allocation2 [shape = 'u8[1024]{0}', space=vmem, size = 0x400, scoped, tag = 'output window, operand 0, single buffered']
    #allocation3 [shape = 's32[1]{0}', space=sflag, size = 0x4, scoped, tag = 'scoped memory for tpu_custom_call.1']
    %11 = vsyncpa [#allocation3], 0
    // Predicated region
    $region2: #{tpu_custom_call.1} parent=1 // pred_check
      _
    $region3: #{tpu_custom_call.1} parent=1 // pred_check_branch
      %13 = sbr.rel (0) target = $region5
    $region4: #{tpu_custom_call.1} parent=1 // pred_region
      _
    $region5: #{tpu_custom_call.1} parent=1 // pred_fallthru
      _
    // Predicated region
    $region6: #{tpu_custom_call.1} parent=1 // pred_check
      _
    $region7: #{tpu_custom_call.1} parent=1 // pred_check_branch
      %15 = sbr.rel (0) target = $region9
    $region8: #{tpu_custom_call.1} parent=1 // pred_region
      _
    $region9: #{tpu_custom_call.1} parent=1 // pred_fallthru
      _
    // Predicated region
    $region10: #{tpu_custom_call.1} parent=1 // pred_check
      _
    $region11: #{tpu_custom_call.1} parent=1 // pred_check_branch
      %17 = sbr.rel (0) target = $region13
    $region12: #{tpu_custom_call.1} parent=1 // pred_region
      _
    $region13: #{tpu_custom_call.1} parent=1 // pred_fallthru
      _
    // Predicated region
    $region14: #{tpu_custom_call.1} parent=1 // pred_check
      _
    $region15: #{tpu_custom_call.1} parent=1 // pred_check_branch
      %19 = sbr.rel (0) target = $region17
    $region16: #{tpu_custom_call.1} parent=1 // pred_region
      _
    $region17: #{tpu_custom_call.1} parent=1 // pred_fallthru
      _
    // Predicated region
    $region18: #{tpu_custom_call.1} parent=1 // pred_check
      _
    $region19: #{tpu_custom_call.1} parent=1 // pred_check_branch
      %21 = sbr.rel (0) target = $region21
    $region20: #{tpu_custom_call.1} parent=1 // pred_region
      _
    $region21: #{tpu_custom_call.1} parent=1 // pred_fallthru
      _
    // Predicated region
    $region22: #{tpu_custom_call.1} parent=1 // pred_check
      _
    $region23: #{tpu_custom_call.1} parent=1 // pred_check_branch
      %23 = sbr.rel (0) target = $region25
    $region24: #{tpu_custom_call.1} parent=1 // pred_region
      _
    $region25: #{tpu_custom_call.1} parent=1 // pred_fallthru
      _
    %v24 = vld [vmem:[%s1] sm:$0xff]
    %v25 = vld [vmem:[%s1 + $0x8] sm:$0xff]
    %v26 = vld [vmem:[%s1 + $0x10] sm:$0xff]
    %v27 = vld [vmem:[%s1 + $0x18] sm:$0xff]
    %v28 = vld [vmem:[%s1 + $0x20] sm:$0xff]
    %v29 = vld [vmem:[%s1 + $0x28] sm:$0xff]
    %v30 = vld [vmem:[%s1 + $0x30] sm:$0xff]
    %v31 = vld [vmem:[%s1 + $0x38] sm:$0xff]
    %v32 = vld [vmem:[%s1 + $0x40] sm:$0xff]
    %v33 = vld [vmem:[%s1 + $0x48] sm:$0xff]
    %v34 = vld [vmem:[%s1 + $0x50] sm:$0xff]
    %v35 = vld [vmem:[%s1 + $0x58] sm:$0xff]
    %v36 = vld [vmem:[%s1 + $0x60] sm:$0xff]
    %v37 = vld [vmem:[%s1 + $0x68] sm:$0xff]
    %v38 = vld [vmem:[%s1 + $0x70] sm:$0xff]
    %v39 = vld [vmem:[%s1 + $0x78] sm:$0xff]
    %v40 = vld [vmem:[%s1 + $0x80] sm:$0xff]
    %v41 = vld [vmem:[%s1 + $0x88] sm:$0xff]
    %v42 = vld [vmem:[%s1 + $0x90] sm:$0xff]
    %v43 = vld [vmem:[%s1 + $0x98] sm:$0xff]
    %v44 = vld [vmem:[%s1 + $0xa0] sm:$0xff]
    %v45 = vld [vmem:[%s1 + $0xa8] sm:$0xff]
    %v46 = vld [vmem:[%s1 + $0xb0] sm:$0xff]
    %v47 = vld [vmem:[%s1 + $0xb8] sm:$0xff]
    %v48 = vld [vmem:[%s1 + $0xc0] sm:$0xff]
    %v49 = vld [vmem:[%s1 + $0xc8] sm:$0xff]
    %v50 = vld [vmem:[%s1 + $0xd0] sm:$0xff]
    %v51 = vld [vmem:[%s1 + $0xd8] sm:$0xff]
    %v52 = vld [vmem:[%s1 + $0xe0] sm:$0xff]
    %v53 = vld [vmem:[%s1 + $0xe8] sm:$0xff]
    %v54 = vld [vmem:[%s1 + $0xf0] sm:$0xff]
    %v55 = vld [vmem:[%s1 + $0xf8] sm:$0xff]
    %v56 = vld [vmem:[%s0] sm:$0xf]
    %v59 = vunpack.c.l.s4 1983009808
    %v60 = vunpack.c.0.s8 %v59
    %v61 = vlaneseq
    %v62 = vshrl.u32 %v61, 7
    %v63 = vsub.s32 %v60, %v62
    %v64 = vrot.slane %v56, %v63
    %v65 = vcombine.high %v64, %v64
    %68 = vmatprep.subr.mxu0 0.0
    %69 = vmatpush1.msra.mxu0 %v24
    %70 = vmatprep.subr.mxu0 0.0
    %71 = vmatpush1.msra.mxu0 %v25
    %72 = vmatprep.subr.mxu0 0.0
    %73 = vmatpush1.msra.mxu0 %v26
    %74 = vmatprep.subr.mxu0 0.0
    %75 = vmatpush1.msra.mxu0 %v27
    %76 = vmatprep.subr.mxu0 0.0
    %77 = vmatpush1.msra.mxu0 %v28
    %78 = vmatprep.subr.mxu0 0.0
    %79 = vmatpush1.msra.mxu0 %v29
    %80 = vmatprep.subr.mxu0 0.0
    %81 = vmatpush1.msra.mxu0 %v30
    %82 = vmatprep.subr.mxu0 0.0
    %83 = vmatpush1.msra.mxu0 %v31
    %84 = vmatprep.subr.mxu0 0.0
    %85 = vmatpush1.msra.mxu0 %v32
    %86 = vmatprep.subr.mxu0 0.0
    %87 = vmatpush1.msra.mxu0 %v33
    %88 = vmatprep.subr.mxu0 0.0
    %89 = vmatpush1.msra.mxu0 %v34
    %90 = vmatprep.subr.mxu0 0.0
    %91 = vmatpush1.msra.mxu0 %v35
    %92 = vmatprep.subr.mxu0 0.0
    %93 = vmatpush1.msra.mxu0 %v36
    %94 = vmatprep.subr.mxu0 0.0
    %95 = vmatpush1.msra.mxu0 %v37
    %96 = vmatprep.subr.mxu0 0.0
    %97 = vmatpush1.msra.mxu0 %v38
    %98 = vmatprep.subr.mxu0 0.0
    %99 = vmatpush1.msra.mxu0 %v39
    %100 = vmatprep.subr.mxu0 0.0
    %101 = vmatpush1.msra.mxu0 %v40
    %102 = vmatprep.subr.mxu0 0.0
    %103 = vmatpush1.msra.mxu0 %v41
    %104 = vmatprep.subr.mxu0 0.0
    %105 = vmatpush1.msra.mxu0 %v42
    %106 = vmatprep.subr.mxu0 0.0
    %107 = vmatpush1.msra.mxu0 %v43
    %108 = vmatprep.subr.mxu0 0.0
    %109 = vmatpush1.msra.mxu0 %v44
    %110 = vmatprep.subr.mxu0 0.0
    %111 = vmatpush1.msra.mxu0 %v45
    %112 = vmatprep.subr.mxu0 0.0
    %113 = vmatpush1.msra.mxu0 %v46
    %114 = vmatprep.subr.mxu0 0.0
    %115 = vmatpush1.msra.mxu0 %v47
    %116 = vmatprep.subr.mxu0 0.0
    %117 = vmatpush1.msra.mxu0 %v48
    %118 = vmatprep.subr.mxu0 0.0
    %119 = vmatpush1.msra.mxu0 %v49
    %120 = vmatprep.subr.mxu0 0.0
    %121 = vmatpush1.msra.mxu0 %v50
    %122 = vmatprep.subr.mxu0 0.0
    %123 = vmatpush1.msra.mxu0 %v51
    %124 = vmatprep.subr.mxu0 0.0
    %125 = vmatpush1.msra.mxu0 %v52
    %126 = vmatprep.subr.mxu0 0.0
    %127 = vmatpush1.msra.mxu0 %v53
    %128 = vmatprep.subr.mxu0 0.0
    %129 = vmatpush1.msra.mxu0 %v54
    %130 = vmatprep.subr.mxu0 0.0
    %131 = vmatpush1.msra.mxu0 %v55
    %132 = vmatprep.mubr.f32.mxu0 %v65
    %133 = vmatmul.mubr.f32.gmra.mrb[0].mxu0 %v64
    %v134 = vpop.f32.mrb[0].mxu0
    %v135 = vadd.f32 0.0, %v134
    %v136 = vpop.f32.mrb[0].mxu0
    %137 = vdwg.mxu0
    %v138 = vld [vmem:[%s0 + $0x4] sm:$0xf]
    %v141 = vunpack.c.l.s4 1983009808
    %v142 = vunpack.c.0.s8 %v141
    %v143 = vlaneseq
    %v144 = vshrl.u32 %v143, 7
    %v145 = vsub.s32 %v142, %v144
    %v146 = vrot.slane %v138, %v145
    %v147 = vcombine.high %v146, %v146
    %150 = vmatprep.subr.mxu0 0.0
    %151 = vmatpush1.msra.mxu0 %v24
    %152 = vmatprep.subr.mxu0 0.0
    %153 = vmatpush1.msra.mxu0 %v25
    %154 = vmatprep.subr.mxu0 0.0
    %155 = vmatpush1.msra.mxu0 %v26
    %156 = vmatprep.subr.mxu0 0.0
    %157 = vmatpush1.msra.mxu0 %v27
    %158 = vmatprep.subr.mxu0 0.0
    %159 = vmatpush1.msra.mxu0 %v28
    %160 = vmatprep.subr.mxu0 0.0
    %161 = vmatpush1.msra.mxu0 %v29
    %162 = vmatprep.subr.mxu0 0.0
    %163 = vmatpush1.msra.mxu0 %v30
    %164 = vmatprep.subr.mxu0 0.0
    %165 = vmatpush1.msra.mxu0 %v31
    %166 = vmatprep.subr.mxu0 0.0
    %167 = vmatpush1.msra.mxu0 %v32
    %168 = vmatprep.subr.mxu0 0.0
    %169 = vmatpush1.msra.mxu0 %v33
    %170 = vmatprep.subr.mxu0 0.0
    %171 = vmatpush1.msra.mxu0 %v34
    %172 = vmatprep.subr.mxu0 0.0
    %173 = vmatpush1.msra.mxu0 %v35
    %174 = vmatprep.subr.mxu0 0.0
    %175 = vmatpush1.msra.mxu0 %v36
    %176 = vmatprep.subr.mxu0 0.0
    %177 = vmatpush1.msra.mxu0 %v37
    %178 = vmatprep.subr.mxu0 0.0
    %179 = vmatpush1.msra.mxu0 %v38
    %180 = vmatprep.subr.mxu0 0.0
    %181 = vmatpush1.msra.mxu0 %v39
    %182 = vmatprep.subr.mxu0 0.0
    %183 = vmatpush1.msra.mxu0 %v40
    %184 = vmatprep.subr.mxu0 0.0
    %185 = vmatpush1.msra.mxu0 %v41
    %186 = vmatprep.subr.mxu0 0.0
    %187 = vmatpush1.msra.mxu0 %v42
    %188 = vmatprep.subr.mxu0 0.0
    %189 = vmatpush1.msra.mxu0 %v43
    %190 = vmatprep.subr.mxu0 0.0
    %191 = vmatpush1.msra.mxu0 %v44
    %192 = vmatprep.subr.mxu0 0.0
    %193 = vmatpush1.msra.mxu0 %v45
    %194 = vmatprep.subr.mxu0 0.0
    %195 = vmatpush1.msra.mxu0 %v46
    %196 = vmatprep.subr.mxu0 0.0
    %197 = vmatpush1.msra.mxu0 %v47
    %198 = vmatprep.subr.mxu0 0.0
    %199 = vmatpush1.msra.mxu0 %v48
    %200 = vmatprep.subr.mxu0 0.0
    %201 = vmatpush1.msra.mxu0 %v49
    %202 = vmatprep.subr.mxu0 0.0
    %203 = vmatpush1.msra.mxu0 %v50
    %204 = vmatprep.subr.mxu0 0.0
    %205 = vmatpush1.msra.mxu0 %v51
    %206 = vmatprep.subr.mxu0 0.0
    %207 = vmatpush1.msra.mxu0 %v52
    %208 = vmatprep.subr.mxu0 0.0
    %209 = vmatpush1.msra.mxu0 %v53
    %210 = vmatprep.subr.mxu0 0.0
    %211 = vmatpush1.msra.mxu0 %v54
    %212 = vmatprep.subr.mxu0 0.0
    %213 = vmatpush1.msra.mxu0 %v55
    %214 = vmatprep.mubr.f32.mxu0 %v147
    %215 = vmatmul.mubr.f32.gmra.mrb[0].mxu0 %v146
    %v216 = vpop.f32.mrb[0].mxu0
    %v217 = vadd.f32 0.0, %v216
    %v218 = vpop.f32.mrb[0].mxu0
    %219 = vdwg.mxu0
    %v220 = vld [vmem:[%s2] sm:$0xff]
    %v221 = vld [vmem:[%s2 + $0x8] sm:$0xff]
    %v222 = vld [vmem:[%s3] sm:$0x1]
    %v224 = vlaneseq
    %v225 = vshrl.u32 %v224, 7
    %v226 = vsub.s32 0, %v225
    %v227 = vrot.slane %v222, %v226
    %vm229 = vcmask 130048
    %v231 = vsel %vm229, %v135, 0
    %233 = vmatprep.subr.mxu0 0.0
    %234 = vmatpush1.msra.mxu0 %v220
    %235 = vmatprep.subr.mxu0 0.0
    %236 = vmatpush1.msra.mxu0 %v221
    %237 = vmatprep.subr.mxu0 0.0
    %238 = vmatpush1.msra.mxu0 0.0
    %239 = vmatprep.subr.mxu0 0.0
    %240 = vmatpush1.msra.mxu0 0.0
    %241 = vmatprep.subr.mxu0 0.0
    %242 = vmatpush1.msra.mxu0 0.0
    %243 = vmatprep.subr.mxu0 0.0
    %244 = vmatpush1.msra.mxu0 0.0
    %245 = vmatprep.subr.mxu0 0.0
    %246 = vmatpush1.msra.mxu0 0.0
    %247 = vmatprep.subr.mxu0 0.0
    %248 = vmatpush1.msra.mxu0 0.0
    %249 = vmatprep.subr.mxu0 0.0
    %250 = vmatpush1.msra.mxu0 0.0
    %251 = vmatprep.subr.mxu0 0.0
    %252 = vmatpush1.msra.mxu0 0.0
    %253 = vmatprep.subr.mxu0 0.0
    %254 = vmatpush1.msra.mxu0 0.0
    %255 = vmatprep.subr.mxu0 0.0
    %256 = vmatpush1.msra.mxu0 0.0
    %257 = vmatprep.subr.mxu0 0.0
    %258 = vmatpush1.msra.mxu0 0.0
    %259 = vmatprep.subr.mxu0 0.0
    %260 = vmatpush1.msra.mxu0 0.0
    %261 = vmatprep.subr.mxu0 0.0
    %262 = vmatpush1.msra.mxu0 0.0
    %263 = vmatprep.subr.mxu0 0.0
    %264 = vmatpush1.msra.mxu0 0.0
    %265 = vmatprep.subr.mxu0 0.0
    %266 = vmatpush1.msra.mxu0 0.0
    %267 = vmatprep.subr.mxu0 0.0
    %268 = vmatpush1.msra.mxu0 0.0
    %269 = vmatprep.subr.mxu0 0.0
    %270 = vmatpush1.msra.mxu0 0.0
    %271 = vmatprep.subr.mxu0 0.0
    %272 = vmatpush1.msra.mxu0 0.0
    %273 = vmatprep.subr.mxu0 0.0
    %274 = vmatpush1.msra.mxu0 0.0
    %275 = vmatprep.subr.mxu0 0.0
    %276 = vmatpush1.msra.mxu0 0.0
    %277 = vmatprep.subr.mxu0 0.0
    %278 = vmatpush1.msra.mxu0 0.0
    %279 = vmatprep.subr.mxu0 0.0
    %280 = vmatpush1.msra.mxu0 0.0
    %281 = vmatprep.subr.mxu0 0.0
    %282 = vmatpush1.msra.mxu0 0.0
    %283 = vmatprep.subr.mxu0 0.0
    %284 = vmatpush1.msra.mxu0 0.0
    %285 = vmatprep.subr.mxu0 0.0
    %286 = vmatpush1.msra.mxu0 0.0
    %287 = vmatprep.subr.mxu0 0.0
    %288 = vmatpush1.msra.mxu0 0.0
    %289 = vmatprep.subr.mxu0 0.0
    %290 = vmatpush1.msra.mxu0 0.0
    %291 = vmatprep.subr.mxu0 0.0
    %292 = vmatpush1.msra.mxu0 0.0
    %293 = vmatprep.subr.mxu0 0.0
    %294 = vmatpush1.msra.mxu0 0.0
    %295 = vmatprep.subr.mxu0 0.0
    %296 = vmatpush1.msra.mxu0 0.0
    %297 = vmatprep.mubr.f32.mxu0 0.0
    %298 = vmatmul.mubr.f32.gmra.mrb[0].mxu0 %v231
    %v299 = vpop.f32.mrb[0].mxu0
    %v300 = vadd.f32 %v227, %v299
    %v301 = vpop.f32.mrb[0].mxu0
    %302 = vdwg.mxu0
    %s303 = scalar_lea.vmem %s2, 16
    %v304 = vld [vmem:[%s303] sm:$0xff]
    %v305 = vld [vmem:[%s303 + $0x8] sm:$0xff]
    %s306 = scalar_lea.vmem %s3, 1
    %v307 = vld [vmem:[%s306] sm:$0x1]
    %v309 = vlaneseq
    %v310 = vshrl.u32 %v309, 7
    %v311 = vsub.s32 0, %v310
    %v312 = vrot.slane %v307, %v311
    %v315 = vsel %vm229, %v217, 0
    %317 = vmatprep.subr.mxu0 0.0
    %318 = vmatpush1.msra.mxu0 %v304
    %319 = vmatprep.subr.mxu0 0.0
    %320 = vmatpush1.msra.mxu0 %v305
    %321 = vmatprep.subr.mxu0 0.0
    %322 = vmatpush1.msra.mxu0 0.0
    %323 = vmatprep.subr.mxu0 0.0
    %324 = vmatpush1.msra.mxu0 0.0
    %325 = vmatprep.subr.mxu0 0.0
    %326 = vmatpush1.msra.mxu0 0.0
    %327 = vmatprep.subr.mxu0 0.0
    %328 = vmatpush1.msra.mxu0 0.0
    %329 = vmatprep.subr.mxu0 0.0
    %330 = vmatpush1.msra.mxu0 0.0
    %331 = vmatprep.subr.mxu0 0.0
    %332 = vmatpush1.msra.mxu0 0.0
    %333 = vmatprep.subr.mxu0 0.0
    %334 = vmatpush1.msra.mxu0 0.0
    %335 = vmatprep.subr.mxu0 0.0
    %336 = vmatpush1.msra.mxu0 0.0
    %337 = vmatprep.subr.mxu0 0.0
    %338 = vmatpush1.msra.mxu0 0.0
    %339 = vmatprep.subr.mxu0 0.0
    %340 = vmatpush1.msra.mxu0 0.0
    %341 = vmatprep.subr.mxu0 0.0
    %342 = vmatpush1.msra.mxu0 0.0
    %343 = vmatprep.subr.mxu0 0.0
    %344 = vmatpush1.msra.mxu0 0.0
    %345 = vmatprep.subr.mxu0 0.0
    %346 = vmatpush1.msra.mxu0 0.0
    %347 = vmatprep.subr.mxu0 0.0
    %348 = vmatpush1.msra.mxu0 0.0
    %349 = vmatprep.subr.mxu0 0.0
    %350 = vmatpush1.msra.mxu0 0.0
    %351 = vmatprep.subr.mxu0 0.0
    %352 = vmatpush1.msra.mxu0 0.0
    %353 = vmatprep.subr.mxu0 0.0
    %354 = vmatpush1.msra.mxu0 0.0
    %355 = vmatprep.subr.mxu0 0.0
    %356 = vmatpush1.msra.mxu0 0.0
    %357 = vmatprep.subr.mxu0 0.0
    %358 = vmatpush1.msra.mxu0 0.0
    %359 = vmatprep.subr.mxu0 0.0
    %360 = vmatpush1.msra.mxu0 0.0
    %361 = vmatprep.subr.mxu0 0.0
    %362 = vmatpush1.msra.mxu0 0.0
    %363 = vmatprep.subr.mxu0 0.0
    %364 = vmatpush1.msra.mxu0 0.0
    %365 = vmatprep.subr.mxu0 0.0
    %366 = vmatpush1.msra.mxu0 0.0
    %367 = vmatprep.subr.mxu0 0.0
    %368 = vmatpush1.msra.mxu0 0.0
    %369 = vmatprep.subr.mxu0 0.0
    %370 = vmatpush1.msra.mxu0 0.0
    %371 = vmatprep.subr.mxu0 0.0
    %372 = vmatpush1.msra.mxu0 0.0
    %373 = vmatprep.subr.mxu0 0.0
    %374 = vmatpush1.msra.mxu0 0.0
    %375 = vmatprep.subr.mxu0 0.0
    %376 = vmatpush1.msra.mxu0 0.0
    %377 = vmatprep.subr.mxu0 0.0
    %378 = vmatpush1.msra.mxu0 0.0
    %379 = vmatprep.subr.mxu0 0.0
    %380 = vmatpush1.msra.mxu0 0.0
    %381 = vmatprep.mubr.f32.mxu0 0.0
    %382 = vmatmul.mubr.f32.gmra.mrb[0].mxu0 %v315
    %v383 = vpop.f32.mrb[0].mxu0
    %v384 = vadd.f32 %v312, %v383
    %v385 = vpop.f32.mrb[0].mxu0
    %386 = vdwg.mxu0
    %v387 = vrcp.pop %v384
    %v388 = vmul.f32 %v300, %v387
    %s389 = scalar_lea.vmem %s2, 32
    %v390 = vld [vmem:[%s389] sm:$0xff]
    %v391 = vld [vmem:[%s389 + $0x8] sm:$0xff]
    %s392 = scalar_lea.vmem %s3, 2
    %v393 = vld [vmem:[%s392] sm:$0x1]
    %v395 = vlaneseq
    %v396 = vshrl.u32 %v395, 7
    %v397 = vsub.s32 0, %v396
    %v398 = vrot.slane %v393, %v397
    %v401 = vsel %vm229, %v388, 0
    %403 = vmatprep.subr.mxu0 0.0
    %404 = vmatpush1.msra.mxu0 %v390
    %405 = vmatprep.subr.mxu0 0.0
    %406 = vmatpush1.msra.mxu0 %v391
    %407 = vmatprep.subr.mxu0 0.0
    %408 = vmatpush1.msra.mxu0 0.0
    %409 = vmatprep.subr.mxu0 0.0
    %410 = vmatpush1.msra.mxu0 0.0
    %411 = vmatprep.subr.mxu0 0.0
    %412 = vmatpush1.msra.mxu0 0.0
    %413 = vmatprep.subr.mxu0 0.0
    %414 = vmatpush1.msra.mxu0 0.0
    %415 = vmatprep.subr.mxu0 0.0
    %416 = vmatpush1.msra.mxu0 0.0
    %417 = vmatprep.subr.mxu0 0.0
    %418 = vmatpush1.msra.mxu0 0.0
    %419 = vmatprep.subr.mxu0 0.0
    %420 = vmatpush1.msra.mxu0 0.0
    %421 = vmatprep.subr.mxu0 0.0
    %422 = vmatpush1.msra.mxu0 0.0
    %423 = vmatprep.subr.mxu0 0.0
    %424 = vmatpush1.msra.mxu0 0.0
    %425 = vmatprep.subr.mxu0 0.0
    %426 = vmatpush1.msra.mxu0 0.0
    %427 = vmatprep.subr.mxu0 0.0
    %428 = vmatpush1.msra.mxu0 0.0
    %429 = vmatprep.subr.mxu0 0.0
    %430 = vmatpush1.msra.mxu0 0.0
    %431 = vmatprep.subr.mxu0 0.0
    %432 = vmatpush1.msra.mxu0 0.0
    %433 = vmatprep.subr.mxu0 0.0
    %434 = vmatpush1.msra.mxu0 0.0
    %435 = vmatprep.subr.mxu0 0.0
    %436 = vmatpush1.msra.mxu0 0.0
    %437 = vmatprep.subr.mxu0 0.0
    %438 = vmatpush1.msra.mxu0 0.0
    %439 = vmatprep.subr.mxu0 0.0
    %440 = vmatpush1.msra.mxu0 0.0
    %441 = vmatprep.subr.mxu0 0.0
    %442 = vmatpush1.msra.mxu0 0.0
    %443 = vmatprep.subr.mxu0 0.0
    %444 = vmatpush1.msra.mxu0 0.0
    %445 = vmatprep.subr.mxu0 0.0
    %446 = vmatpush1.msra.mxu0 0.0
    %447 = vmatprep.subr.mxu0 0.0
    %448 = vmatpush1.msra.mxu0 0.0
    %449 = vmatprep.subr.mxu0 0.0
    %450 = vmatpush1.msra.mxu0 0.0
    %451 = vmatprep.subr.mxu0 0.0
    %452 = vmatpush1.msra.mxu0 0.0
    %453 = vmatprep.subr.mxu0 0.0
    %454 = vmatpush1.msra.mxu0 0.0
    %455 = vmatprep.subr.mxu0 0.0
    %456 = vmatpush1.msra.mxu0 0.0
    %457 = vmatprep.subr.mxu0 0.0
    %458 = vmatpush1.msra.mxu0 0.0
    %459 = vmatprep.subr.mxu0 0.0
    %460 = vmatpush1.msra.mxu0 0.0
    %461 = vmatprep.subr.mxu0 0.0
    %462 = vmatpush1.msra.mxu0 0.0
    %463 = vmatprep.subr.mxu0 0.0
    %464 = vmatpush1.msra.mxu0 0.0
    %465 = vmatprep.subr.mxu0 0.0
    %466 = vmatpush1.msra.mxu0 0.0
    %467 = vmatprep.mubr.f32.mxu0 0.0
    %468 = vmatmul.mubr.f32.gmra.mrb[0].mxu0 %v401
    %v469 = vpop.f32.mrb[0].mxu0
    %v470 = vadd.f32 %v398, %v469
    %v471 = vpop.f32.mrb[0].mxu0
    %472 = vdwg.mxu0
    %vm473 = vcmp.lt.f32.partialorder %v470, 0.0
    %v474 = vsel %vm473, -1.0, 1.0
    %v475 = vand.u32 2147483647, %v470
    %vm476 = vcmp.gt.f32.partialorder %v475, 2.4142137
    %vm477 = vcmp.le.f32.partialorder %v475, 2.4142137
    %vm478 = vcmp.gt.f32.partialorder %v475, 0.41421357
    %vm479 = vmand %vm477, %vm478
    %v480 = vsub.f32 %v475, 1.0
    %v481 = vsel %vm479, %v480, %v475
    %v482 = vsel %vm476, -1.0, %v481
    %v483 = vadd.f32 %v475, 1.0
    %v484 = vsel %vm479, %v483, 1.0
    %v485 = vsel %vm476, %v475, %v484
    %v486 = vrcp.pop %v485
    %v487 = vmul.f32 %v482, %v486
    %v488 = vsel %vm479, 0.7853982, 0.0
    %v489 = vsel %vm476, 1.5707964, %v488
    %v490 = vmul.f32 %v487, %v487
    %v491 = vmul.f32 %v490, 0.080537446
    %v492 = vsub.f32 %v491, 0.13877685
    %v493 = vmul.f32 %v492, %v490
    %v494 = vadd.f32 %v493, 0.19977711
    %v495 = vmul.f32 %v494, %v490
    %v496 = vsub.f32 %v495, 0.3333295
    %v497 = vmul.f32 %v496, %v490
    %v498 = vmul.f32 %v497, %v487
    %v499 = vadd.f32 %v489, %v498
    %v500 = vadd.f32 %v499, %v487
    %v501 = vmul.f32 %v474, %v500
    %v502 = vld [vmem:[%s4] sm:$0xff]
    %v503 = vld [vmem:[%s4 + $0x8] sm:$0xff]
    %v504 = vld [vmem:[%s5] sm:$0x1]
    %v506 = vlaneseq
    %v507 = vshrl.u32 %v506, 7
    %v508 = vsub.s32 0, %v507
    %v509 = vrot.slane %v504, %v508
    %v512 = vsel %vm229, %v501, 0
    %514 = vmatprep.subr.mxu0 0.0
    %515 = vmatpush1.msra.mxu0 %v502
    %516 = vmatprep.subr.mxu0 0.0
    %517 = vmatpush1.msra.mxu0 %v503
    %518 = vmatprep.subr.mxu0 0.0
    %519 = vmatpush1.msra.mxu0 0.0
    %520 = vmatprep.subr.mxu0 0.0
    %521 = vmatpush1.msra.mxu0 0.0
    %522 = vmatprep.subr.mxu0 0.0
    %523 = vmatpush1.msra.mxu0 0.0
    %524 = vmatprep.subr.mxu0 0.0
    %525 = vmatpush1.msra.mxu0 0.0
    %526 = vmatprep.subr.mxu0 0.0
    %527 = vmatpush1.msra.mxu0 0.0
    %528 = vmatprep.subr.mxu0 0.0
    %529 = vmatpush1.msra.mxu0 0.0
    %530 = vmatprep.subr.mxu0 0.0
    %531 = vmatpush1.msra.mxu0 0.0
    %532 = vmatprep.subr.mxu0 0.0
    %533 = vmatpush1.msra.mxu0 0.0
    %534 = vmatprep.subr.mxu0 0.0
    %535 = vmatpush1.msra.mxu0 0.0
    %536 = vmatprep.subr.mxu0 0.0
    %537 = vmatpush1.msra.mxu0 0.0
    %538 = vmatprep.subr.mxu0 0.0
    %539 = vmatpush1.msra.mxu0 0.0
    %540 = vmatprep.subr.mxu0 0.0
    %541 = vmatpush1.msra.mxu0 0.0
    %542 = vmatprep.subr.mxu0 0.0
    %543 = vmatpush1.msra.mxu0 0.0
    %544 = vmatprep.subr.mxu0 0.0
    %545 = vmatpush1.msra.mxu0 0.0
    %546 = vmatprep.subr.mxu0 0.0
    %547 = vmatpush1.msra.mxu0 0.0
    %548 = vmatprep.subr.mxu0 0.0
    %549 = vmatpush1.msra.mxu0 0.0
    %550 = vmatprep.subr.mxu0 0.0
    %551 = vmatpush1.msra.mxu0 0.0
    %552 = vmatprep.subr.mxu0 0.0
    %553 = vmatpush1.msra.mxu0 0.0
    %554 = vmatprep.subr.mxu0 0.0
    %555 = vmatpush1.msra.mxu0 0.0
    %556 = vmatprep.subr.mxu0 0.0
    %557 = vmatpush1.msra.mxu0 0.0
    %558 = vmatprep.subr.mxu0 0.0
    %559 = vmatpush1.msra.mxu0 0.0
    %560 = vmatprep.subr.mxu0 0.0
    %561 = vmatpush1.msra.mxu0 0.0
    %562 = vmatprep.subr.mxu0 0.0
    %563 = vmatpush1.msra.mxu0 0.0
    %564 = vmatprep.subr.mxu0 0.0
    %565 = vmatpush1.msra.mxu0 0.0
    %566 = vmatprep.subr.mxu0 0.0
    %567 = vmatpush1.msra.mxu0 0.0
    %568 = vmatprep.subr.mxu0 0.0
    %569 = vmatpush1.msra.mxu0 0.0
    %570 = vmatprep.subr.mxu0 0.0
    %571 = vmatpush1.msra.mxu0 0.0
    %572 = vmatprep.subr.mxu0 0.0
    %573 = vmatpush1.msra.mxu0 0.0
    %574 = vmatprep.subr.mxu0 0.0
    %575 = vmatpush1.msra.mxu0 0.0
    %576 = vmatprep.subr.mxu0 0.0
    %577 = vmatpush1.msra.mxu0 0.0
    %578 = vmatprep.mubr.f32.mxu0 0.0
    %579 = vmatmul.mubr.f32.gmra.mrb[0].mxu0 %v512
    %v580 = vpop.f32.mrb[0].mxu0
    %v581 = vadd.f32 %v509, %v580
    %v582 = vpop.f32.mrb[0].mxu0
    %583 = vdwg.mxu0
    %v584 = vand.u32 2147483647, %v581
    %vm585 = vcmask 9216
    %586 = vst.msk [vmem:[#allocation2] sm:$0x3] %vm585, %v584
    // Predicated region
    $region26: #{tpu_custom_call.1} parent=1 // pred_check
      _
    $region27: #{tpu_custom_call.1} parent=1 // pred_check_branch
      %588 = sbr.rel (0) target = $region29
    $region28: #{tpu_custom_call.1} parent=1 // pred_region
      %s590 = ssub.s32 32, 32
      %591 = vsyncadd [#allocation3], %s590
      %s593 = sshll.u32 [#allocation2], 4
      %s594 = int_to_ptr.vmem [resolvable:$true] %s593
      %596 = dma.vmem_to_hbm [thread:$0]  %s594, 32, %s6, [#allocation3]
    $region29: #{tpu_custom_call.1} parent=1 // pred_fallthru
      _
    // Predicated region
    $region30: #{tpu_custom_call.1} parent=1 // pred_check
      _
    $region31: #{tpu_custom_call.1} parent=1 // pred_check_branch
      %598 = sbr.rel (0) target = $region33
    $region32: #{tpu_custom_call.1} parent=1 // pred_region
      %599 = dma.done [#allocation3], 32
    $region33: #{tpu_custom_call.1} parent=1 // pred_fallthru
      _
    %600 = vsyncpa [#allocation3], 1

</llo_original>
